<compile_context>
chip_gen: v5e
topology: v5e:2x2
jax: 0.10.0
libtpu: 0.0.40
codegen_flags: <defaults>
</compile_context>

<pallas_src>
import math

import jax
import jax.numpy as jnp
from jax.experimental import pallas as pl
from jax.experimental.pallas import tpu as pltpu

_LANE = 128
_SUBLANE = 8


def _round_up(x, m):
    return ((x + m - 1) // m) * m


def _make_decoder_kernel(n_hidden: int, apply_sigmoid: bool):
    """Kernel ref order:
         z_ref, [w_i, ss_i] * n_hidden, w_out, b_out,   (inputs)
         hid_out_0 .. hid_out_{n-1}, x_out              (outputs)
    """
    n_in = 1 + 2 * n_hidden + 2

    def kernel(*refs):
        in_refs = refs[:n_in]
        out_refs = refs[n_in:]

        # bf16 activations feed the MXU; epilogue stays in f32 (VPU/EUP).
        h = in_refs[0][...].astype(jnp.bfloat16)
        idx = 1
        for li in range(n_hidden):
            w = in_refs[idx][...]            # (in_pad, out_pad)  bf16
            ss = in_refs[idx + 1][...]       # (2, out_pad) f32: scale / shift
            idx += 2
            acc = jnp.dot(h, w, preferred_element_type=jnp.float32)
            acc = acc * ss[0:1, :] + ss[1:2, :]      # folded eval-mode BN + bias
            acc = jnp.maximum(acc, 0.0)              # ReLU
            out_refs[li][...] = acc.astype(out_refs[li].dtype)
            h = acc.astype(jnp.bfloat16)

        w_out = in_refs[idx][...]            # (h_pad, x_pad)  bf16
        b_out = in_refs[idx + 1][...]        # (1, x_pad)      f32
        x = jnp.dot(h, w_out, preferred_element_type=jnp.float32) + b_out
        if apply_sigmoid:
            x = 1.0 / (1.0 + jnp.exp(-x))            # nn.Sigmoid()
        out_refs[n_hidden][...] = x.astype(out_refs[n_hidden].dtype)

    return kernel


def decoder_forward(z, params, apply_sigmoid=True):
    """z: (batch, z_dim) f32.  Returns (de_h list, x_bar) like Decoder.forward."""
    z_dim = params["z_dim"]
    h_dims = params["h_dims"]
    x_dim = params["x_dim"]
    n_hidden = len(h_dims)

    batch = z.shape[0]
    z_pad = _round_up(max(z_dim, 1), _LANE)
    h_pads = [_round_up(h, _LANE) for h in h_dims]
    x_pad = _round_up(x_dim, _LANE)

    # Batch tile: 128 rows for real workloads; tiny batches round up to the
    # sublane multiple so blocks stay (8,128)-aligned.
    tb = 128 if batch >= 128 else _round_up(batch, _SUBLANE)
    b_pad = _round_up(batch, tb)
    grid = (b_pad // tb,)

    z_p = jnp.zeros((b_pad, z_pad), jnp.float32).at[:batch, :z_dim].set(
        z.astype(jnp.float32))

    flat_inputs = [z_p]
    in_specs = [pl.BlockSpec((tb, z_pad), lambda i: (i, 0))]
    for li in range(n_hidden):
        w = params["hidden_w"][li]
        ss = params["hidden_ss"][li]
        flat_inputs += [w, ss]
        in_specs += [
            pl.BlockSpec(w.shape, lambda i: (0, 0)),    # VMEM-resident weights
            pl.BlockSpec(ss.shape, lambda i: (0, 0)),
        ]
    flat_inputs += [params["out_w"], params["out_b"]]
    in_specs += [
        pl.BlockSpec(params["out_w"].shape, lambda i: (0, 0)),
        pl.BlockSpec(params["out_b"].shape, lambda i: (0, 0)),
    ]

    out_shapes = tuple(
        jax.ShapeDtypeStruct((b_pad, hp), jnp.float32) for hp in h_pads
    ) + (jax.ShapeDtypeStruct((b_pad, x_pad), jnp.float32),)
    out_specs = tuple(
        pl.BlockSpec((tb, hp), lambda i: (i, 0)) for hp in h_pads
    ) + (pl.BlockSpec((tb, x_pad), lambda i: (i, 0)),)

    outs = pl.pallas_call(
        _make_decoder_kernel(n_hidden, apply_sigmoid),
        out_shape=out_shapes,
        grid=grid,
        in_specs=in_specs,
        out_specs=out_specs,
        compiler_params=pltpu.CompilerParams(
            dimension_semantics=("parallel",)),
    )(*flat_inputs)

    de_h = [outs[li][:batch, :h_dims[li]] for li in range(n_hidden)]
    x_bar = outs[n_hidden][:batch, :x_dim]
    return de_h, x_bar


def init_decoder_params(key, z_dim, h_dims, x_dim, eps=1e-5):
    """Deterministic params mirroring the PyTorch Decoder (eval mode):
    Linear weights (stored transposed as (in, out)), BatchNorm1d running
    stats (mean=0, var=1, gamma=1, beta=0) folded with the Linear bias into a
    (2, fan_out) scale/shift row pair.  Weights are zero-padded to lane
    multiples and cast to bf16 for the MXU."""

    def xavier_normal(key, fan_in, fan_out):
        std = math.sqrt(2.0 / (fan_in + fan_out))
        return jax.random.normal(key, (fan_in, fan_out), jnp.float32) * std

    z_pad = _round_up(max(z_dim, 1), _LANE)
    h_pads = [_round_up(h, _LANE) for h in h_dims]
    x_pad = _round_up(x_dim, _LANE)

    params = {
        "z_dim": z_dim, "h_dims": list(h_dims), "x_dim": x_dim,
        "hidden_w": [], "hidden_ss": [],
    }
    in_dims = [z_dim] + list(h_dims)
    in_pads = [z_pad] + h_pads
    for li in range(len(h_dims)):
        key, sub = jax.random.split(key)
        fan_in, fan_out = in_dims[li], in_dims[li + 1]
        w = xavier_normal(sub, fan_in, fan_out)
        lin_bias = jnp.zeros((fan_out,), jnp.float32)
        gamma = jnp.ones((fan_out,), jnp.float32)
        beta = jnp.zeros((fan_out,), jnp.float32)
        running_mean = jnp.zeros((fan_out,), jnp.float32)
        running_var = jnp.ones((fan_out,), jnp.float32)
        # Fold eval-mode BN and the linear bias:
        #   y = ((x@W + b) - mean) * gamma/sqrt(var+eps) + beta
        #     = (x@W) * scale + shift
        scale = gamma / jnp.sqrt(running_var + eps)
        shift = (lin_bias - running_mean) * scale + beta

        w_p = jnp.zeros((in_pads[li], in_pads[li + 1]), jnp.float32)
        w_p = w_p.at[:fan_in, :fan_out].set(w).astype(jnp.bfloat16)
        ss_p = jnp.zeros((2, in_pads[li + 1]), jnp.float32)
        ss_p = ss_p.at[0, :fan_out].set(scale).at[1, :fan_out].set(shift)
        params["hidden_w"].append(w_p)
        params["hidden_ss"].append(ss_p)

    key, sub = jax.random.split(key)
    h_last, h_last_pad = in_dims[-1], in_pads[-1]
    w_out = xavier_normal(sub, h_last, x_dim)
    w_out_p = jnp.zeros((h_last_pad, x_pad), jnp.float32)
    params["out_w"] = w_out_p.at[:h_last, :x_dim].set(w_out).astype(jnp.bfloat16)
    params["out_b"] = jnp.zeros((1, x_pad), jnp.float32)
    return params


def _reference_forward(z, params, apply_sigmoid=True):
    """Plain-JAX reference using the same padded/bf16 params."""
    z_dim, h_dims, x_dim = params["z_dim"], params["h_dims"], params["x_dim"]
    batch = z.shape[0]
    first_w = params["hidden_w"][0] if h_dims else params["out_w"]
    z_pad = first_w.shape[0]
    h = jnp.zeros((batch, z_pad), jnp.float32).at[:, :z_dim].set(z)
    de_h = []
    for w, ss in zip(params["hidden_w"], params["hidden_ss"]):
        a = jnp.dot(h.astype(jnp.bfloat16), w, preferred_element_type=jnp.float32)
        a = jnp.maximum(a * ss[0:1, :] + ss[1:2, :], 0.0)
        de_h.append(a)
        h = a
    x = jnp.dot(h.astype(jnp.bfloat16), params["out_w"],
                preferred_element_type=jnp.float32) + params["out_b"]
    if apply_sigmoid:
        x = 1.0 / (1.0 + jnp.exp(-x))
    de_h = [a[:, :d] for a, d in zip(de_h, h_dims)]
    return de_h, x[:, :x_dim]


if __name__ == "__main__":
    # Small shapes consistent with the module: dimsR = [z_dim, [h1, h2], x_dim]
    batch = 8
    z_dim = 32
    h_dims = [64, 32]
    x_dim = 16

    key = jax.random.PRNGKey(0)
    key, zkey = jax.random.split(key)
    z = jax.random.normal(zkey, (batch, z_dim), jnp.float32)

    params = init_decoder_params(key, z_dim, h_dims, x_dim)

    # Default Decoder.forward path: act = nn.Sigmoid().
    de_h, x_bar = decoder_forward(z, params, apply_sigmoid=True)
    jax.block_until_ready(x_bar)

    # Shape / sanity checks matching the PyTorch module's outputs.
    assert len(de_h) == len(h_dims)
    for a, d in zip(de_h, h_dims):
        assert a.shape == (batch, d)
        assert bool(jnp.all(jnp.isfinite(a))) and bool(jnp.all(a >= 0.0))
    assert x_bar.shape == (batch, x_dim)
    assert bool(jnp.all(jnp.isfinite(x_bar)))
    assert bool(jnp.all((x_bar >= 0.0) & (x_bar <= 1.0)))

    # Numerical check against a plain-JAX reference (same bf16 operands).
    ref_de_h, ref_x = _reference_forward(z, params, apply_sigmoid=True)
    for a, r in zip(de_h, ref_de_h):
        assert bool(jnp.allclose(a, r, atol=2e-2, rtol=2e-2))
    assert bool(jnp.allclose(x_bar, ref_x, atol=2e-2, rtol=2e-2))

    print("KERNEL_OK")
</pallas_src>

<mosaic_0001>
module attributes {stable_mosaic.version = 11 : i64} {
  func.func @kernel(%arg0: i32, %arg1: memref<8x128xf32, #tpu.memory_space<vmem>>, %arg2: memref<128x128xbf16, #tpu.memory_space<vmem>>, %arg3: memref<2x128xf32, #tpu.memory_space<vmem>>, %arg4: memref<128x128xbf16, #tpu.memory_space<vmem>>, %arg5: memref<2x128xf32, #tpu.memory_space<vmem>>, %arg6: memref<128x128xbf16, #tpu.memory_space<vmem>>, %arg7: memref<1x128xf32, #tpu.memory_space<vmem>>, %arg8: memref<8x128xf32, #tpu.memory_space<vmem>>, %arg9: memref<8x128xf32, #tpu.memory_space<vmem>>, %arg10: memref<8x128xf32, #tpu.memory_space<vmem>>) attributes {dimension_semantics = [#tpu.dimension_semantics<parallel>], iteration_bounds = array<i64: 1>, scalar_prefetch = 0 : i64, scratch_operands = 0 : i64, tpu.core_type = #tpu.core_type<tc>, window_params = [{transform_indices = @transform_0, window_bounds = array<i64: 8, 128>}, {pipeline_mode = #tpu.pipeline_mode<synchronous>, transform_indices = @transform_1, window_bounds = array<i64: 128, 128>}, {pipeline_mode = #tpu.pipeline_mode<synchronous>, transform_indices = @transform_2, window_bounds = array<i64: 2, 128>}, {pipeline_mode = #tpu.pipeline_mode<synchronous>, transform_indices = @transform_3, window_bounds = array<i64: 128, 128>}, {pipeline_mode = #tpu.pipeline_mode<synchronous>, transform_indices = @transform_4, window_bounds = array<i64: 2, 128>}, {pipeline_mode = #tpu.pipeline_mode<synchronous>, transform_indices = @transform_5, window_bounds = array<i64: 128, 128>}, {pipeline_mode = #tpu.pipeline_mode<synchronous>, transform_indices = @transform_6, window_bounds = array<i64: 1, 128>}, {transform_indices = @transform_7, window_bounds = array<i64: 8, 128>}, {transform_indices = @transform_8, window_bounds = array<i64: 8, 128>}, {transform_indices = @transform_9, window_bounds = array<i64: 8, 128>}]} {
    %c0 = arith.constant 0 : index
    %c0_0 = arith.constant 0 : index
    %0 = vector.load %arg1[%c0, %c0_0] : memref<8x128xf32, #tpu.memory_space<vmem>>, vector<8x128xf32>
    %1 = arith.truncf %0 : vector<8x128xf32> to vector<8x128xbf16>
    %c0_1 = arith.constant 0 : index
    %c0_2 = arith.constant 0 : index
    %2 = vector.load %arg2[%c0_1, %c0_2] : memref<128x128xbf16, #tpu.memory_space<vmem>>, vector<128x128xbf16>
    %c0_3 = arith.constant 0 : index
    %c0_4 = arith.constant 0 : index
    %3 = vector.load %arg3[%c0_3, %c0_4] : memref<2x128xf32, #tpu.memory_space<vmem>>, vector<2x128xf32>
    %cst = arith.constant dense<0.000000e+00> : vector<8x128xf32>
    %4 = tpu.matmul %1, %2, %cst {dimension_numbers = #tpu.dot_dimension_numbers<[1], [0], [0], [1], [0, 0, 1, 1], [], []>} : vector<8x128xbf16>, vector<128x128xbf16>, vector<8x128xf32> -> vector<8x128xf32>
    %5 = vector.extract_strided_slice %3 {offsets = [0, 0], sizes = [1, 128], strides = [1, 1]} : vector<2x128xf32> to vector<1x128xf32>
    %6 = vector.broadcast %5 : vector<1x128xf32> to vector<8x128xf32>
    %7 = arith.mulf %4, %6 : vector<8x128xf32>
    %8 = vector.extract_strided_slice %3 {offsets = [1, 0], sizes = [1, 128], strides = [1, 1]} : vector<2x128xf32> to vector<1x128xf32>
    %9 = vector.broadcast %8 : vector<1x128xf32> to vector<8x128xf32>
    %10 = arith.addf %7, %9 : vector<8x128xf32>
    %cst_5 = arith.constant 0.000000e+00 : f32
    %11 = vector.broadcast %cst_5 : f32 to vector<8x128xf32>
    %12 = arith.maximumf %10, %11 : vector<8x128xf32>
    %c0_6 = arith.constant 0 : index
    %c0_7 = arith.constant 0 : index
    %13 = vector.load %arg8[%c0_6, %c0_7] : memref<8x128xf32, #tpu.memory_space<vmem>>, vector<8x128xf32>
    tpu.vector_store %arg8[%c0_6, %c0_7], %12 {strides = array<i32>} : memref<8x128xf32, #tpu.memory_space<vmem>>, vector<8x128xf32>,
    %14 = arith.truncf %12 : vector<8x128xf32> to vector<8x128xbf16>
    %c0_8 = arith.constant 0 : index
    %c0_9 = arith.constant 0 : index
    %15 = vector.load %arg4[%c0_8, %c0_9] : memref<128x128xbf16, #tpu.memory_space<vmem>>, vector<128x128xbf16>
    %c0_10 = arith.constant 0 : index
    %c0_11 = arith.constant 0 : index
    %16 = vector.load %arg5[%c0_10, %c0_11] : memref<2x128xf32, #tpu.memory_space<vmem>>, vector<2x128xf32>
    %cst_12 = arith.constant dense<0.000000e+00> : vector<8x128xf32>
    %17 = tpu.matmul %14, %15, %cst_12 {dimension_numbers = #tpu.dot_dimension_numbers<[1], [0], [0], [1], [0, 0, 1, 1], [], []>} : vector<8x128xbf16>, vector<128x128xbf16>, vector<8x128xf32> -> vector<8x128xf32>
    %18 = vector.extract_strided_slice %16 {offsets = [0, 0], sizes = [1, 128], strides = [1, 1]} : vector<2x128xf32> to vector<1x128xf32>
    %19 = vector.broadcast %18 : vector<1x128xf32> to vector<8x128xf32>
    %20 = arith.mulf %17, %19 : vector<8x128xf32>
    %21 = vector.extract_strided_slice %16 {offsets = [1, 0], sizes = [1, 128], strides = [1, 1]} : vector<2x128xf32> to vector<1x128xf32>
    %22 = vector.broadcast %21 : vector<1x128xf32> to vector<8x128xf32>
    %23 = arith.addf %20, %22 : vector<8x128xf32>
    %cst_13 = arith.constant 0.000000e+00 : f32
    %24 = vector.broadcast %cst_13 : f32 to vector<8x128xf32>
    %25 = arith.maximumf %23, %24 : vector<8x128xf32>
    %c0_14 = arith.constant 0 : index
    %c0_15 = arith.constant 0 : index
    %26 = vector.load %arg9[%c0_14, %c0_15] : memref<8x128xf32, #tpu.memory_space<vmem>>, vector<8x128xf32>
    tpu.vector_store %arg9[%c0_14, %c0_15], %25 {strides = array<i32>} : memref<8x128xf32, #tpu.memory_space<vmem>>, vector<8x128xf32>,
    %27 = arith.truncf %25 : vector<8x128xf32> to vector<8x128xbf16>
    %c0_16 = arith.constant 0 : index
    %c0_17 = arith.constant 0 : index
    %28 = vector.load %arg6[%c0_16, %c0_17] : memref<128x128xbf16, #tpu.memory_space<vmem>>, vector<128x128xbf16>
    %c0_18 = arith.constant 0 : index
    %c0_19 = arith.constant 0 : index
    %29 = vector.load %arg7[%c0_18, %c0_19] : memref<1x128xf32, #tpu.memory_space<vmem>>, vector<1x128xf32>
    %cst_20 = arith.constant dense<0.000000e+00> : vector<8x128xf32>
    %30 = tpu.matmul %27, %28, %cst_20 {dimension_numbers = #tpu.dot_dimension_numbers<[1], [0], [0], [1], [0, 0, 1, 1], [], []>} : vector<8x128xbf16>, vector<128x128xbf16>, vector<8x128xf32> -> vector<8x128xf32>
    %31 = vector.broadcast %29 : vector<1x128xf32> to vector<8x128xf32>
    %32 = arith.addf %30, %31 : vector<8x128xf32>
    %cst_21 = arith.constant 0.000000e+00 : f32
    %33 = vector.broadcast %cst_21 : f32 to vector<8x128xf32>
    %34 = arith.subf %33, %32 : vector<8x128xf32>
    %35 = math.exp %34 : vector<8x128xf32>
    %cst_22 = arith.constant 1.000000e+00 : f32
    %36 = vector.broadcast %cst_22 : f32 to vector<8x128xf32>
    %37 = arith.addf %36, %35 : vector<8x128xf32>
    %cst_23 = arith.constant 1.000000e+00 : f32
    %38 = vector.broadcast %cst_23 : f32 to vector<8x128xf32>
    %39 = arith.divf %38, %37 : vector<8x128xf32>
    %c0_24 = arith.constant 0 : index
    %c0_25 = arith.constant 0 : index
    %40 = vector.load %arg10[%c0_24, %c0_25] : memref<8x128xf32, #tpu.memory_space<vmem>>, vector<8x128xf32>
    tpu.vector_store %arg10[%c0_24, %c0_25], %39 {strides = array<i32>} : memref<8x128xf32, #tpu.memory_space<vmem>>, vector<8x128xf32>,
    return
  }
  func.func @transform_0(%arg0: i32) -> (i32, i32) {
    %c0_i32 = arith.constant 0 : i32
    %c0_i32_0 = arith.constant 0 : i32
    return %arg0, %c0_i32 : i32, i32
  }
  func.func @transform_1(%arg0: i32) -> (i32, i32) {
    %c0_i32 = arith.constant 0 : i32
    %c0_i32_0 = arith.constant 0 : i32
    %c0_i32_1 = arith.constant 0 : i32
    return %c0_i32, %c0_i32_0 : i32, i32
  }
  func.func @transform_2(%arg0: i32) -> (i32, i32) {
    %c0_i32 = arith.constant 0 : i32
    %c0_i32_0 = arith.constant 0 : i32
    %c0_i32_1 = arith.constant 0 : i32
    return %c0_i32, %c0_i32_0 : i32, i32
  }
  func.func @transform_3(%arg0: i32) -> (i32, i32) {
    %c0_i32 = arith.constant 0 : i32
    %c0_i32_0 = arith.constant 0 : i32
    %c0_i32_1 = arith.constant 0 : i32
    return %c0_i32, %c0_i32_0 : i32, i32
  }
  func.func @transform_4(%arg0: i32) -> (i32, i32) {
    %c0_i32 = arith.constant 0 : i32
    %c0_i32_0 = arith.constant 0 : i32
    %c0_i32_1 = arith.constant 0 : i32
    return %c0_i32, %c0_i32_0 : i32, i32
  }
  func.func @transform_5(%arg0: i32) -> (i32, i32) {
    %c0_i32 = arith.constant 0 : i32
    %c0_i32_0 = arith.constant 0 : i32
    %c0_i32_1 = arith.constant 0 : i32
    return %c0_i32, %c0_i32_0 : i32, i32
  }
  func.func @transform_6(%arg0: i32) -> (i32, i32) {
    %c0_i32 = arith.constant 0 : i32
    %c0_i32_0 = arith.constant 0 : i32
    %c0_i32_1 = arith.constant 0 : i32
    return %c0_i32, %c0_i32_0 : i32, i32
  }
  func.func @transform_7(%arg0: i32) -> (i32, i32) {
    %c0_i32 = arith.constant 0 : i32
    %c0_i32_0 = arith.constant 0 : i32
    return %arg0, %c0_i32 : i32, i32
  }
  func.func @transform_8(%arg0: i32) -> (i32, i32) {
    %c0_i32 = arith.constant 0 : i32
    %c0_i32_0 = arith.constant 0 : i32
    return %arg0, %c0_i32 : i32, i32
  }
  func.func @transform_9(%arg0: i32) -> (i32, i32) {
    %c0_i32 = arith.constant 0 : i32
    %c0_i32_0 = arith.constant 0 : i32
    return %arg0, %c0_i32 : i32, i32
  }
}

</mosaic_0001>

<llo_original>
// kernel: tpu_custom_call.1
$region0: #{tpu_custom_call.1}
  #allocation0 [shape = 'u32[]', space=smem, size = 0x4, offset = 0x4, fixed_abs, tag = 'smem constant byte address 0x4 - core index']
  #allocation1 [shape = 'u32[72,128]{1,0:T(1,128)}', space=vmem, size = 0x9000, scoped, tag = 'internal scratch']
  %s0 = inlined_call_operand.hbm [shape: f32[8,128], index: 0, kind: input, shape index: {}]
  %s1 = inlined_call_operand.hbm [shape: bf16[128,128], index: 1, kind: input, shape index: {}]
  %s2 = inlined_call_operand.hbm [shape: f32[2,128], index: 2, kind: input, shape index: {}]
  %s3 = inlined_call_operand.hbm [shape: bf16[128,128], index: 3, kind: input, shape index: {}]
  %s4 = inlined_call_operand.vmem [shape: f32[2,128], index: 4, kind: input, shape index: {}]
  %s5 = inlined_call_operand.hbm [shape: bf16[128,128], index: 5, kind: input, shape index: {}]
  %s6 = inlined_call_operand.vmem [shape: f32[1,128], index: 6, kind: input, shape index: {}]
  %s7 = inlined_call_operand.hbm [shape: f32[8,128], index: 7, kind: output, shape index: {0}]
  %s8 = inlined_call_operand.hbm [shape: f32[8,128], index: 8, kind: output, shape index: {1}]
  %s9 = inlined_call_operand.hbm [shape: f32[8,128], index: 9, kind: output, shape index: {2}]
  %10 = xla_tuple %s7, %s8, %s9
  %s11 = sld [smem:[#allocation0]]
  $region74: #{tpu_custom_call.1} parent=0
    _
  %s13 = ssub.s32 1, %s11
  %s14 = scalar_select 0, %s13, %s11
  $region1: #{tpu_custom_call.1} parent=0
    #allocation2 [shape = 'u8[4096]{0}', space=vmem, size = 0x1000, scoped, tag = 'input window, operand 0, single buffered']
    #allocation3 [shape = 's32[1]{0}', space=sflag, size = 0x4, scoped, tag = 'scoped memory for tpu_custom_call.1']
    #allocation4 [shape = 's32[1]{0}', space=sflag, size = 0x4, scoped, tag = 'scoped memory for tpu_custom_call.1']
    #allocation5 [shape = 'u8[32768]{0}', space=vmem, size = 0x8000, scoped, tag = 'input window, operand 1, single buffered']
    #allocation6 [shape = 's32[1]{0}', space=sflag, size = 0x4, scoped, tag = 'scoped memory for tpu_custom_call.1']
    #allocation7 [shape = 'u8[1024]{0}', space=vmem, size = 0x400, scoped, tag = 'input window, operand 2, single buffered']
    #allocation8 [shape = 'u8[32768]{0}', space=vmem, size = 0x8000, scoped, tag = 'input window, operand 3, single buffered']
    #allocation9 [shape = 's32[1]{0}', space=sflag, size = 0x4, scoped, tag = 'scoped memory for tpu_custom_call.1']
    #allocation10 [shape = 'u8[32768]{0}', space=vmem, size = 0x8000, scoped, tag = 'input window, operand 5, single buffered']
    #allocation11 [shape = 'u8[4096]{0}', space=vmem, size = 0x1000, scoped, tag = 'output window, operand 0, single buffered']
    #allocation12 [shape = 'u8[4096]{0}', space=vmem, size = 0x1000, scoped, tag = 'output window, operand 1, single buffered']
    #allocation13 [shape = 's32[1]{0}', space=sflag, size = 0x4, scoped, tag = 'scoped memory for tpu_custom_call.1']
    #allocation14 [shape = 'u8[4096]{0}', space=vmem, size = 0x1000, scoped, tag = 'output window, operand 2, single buffered']
    %15 = vsyncpa [#allocation3], 0
    %16 = vsyncpa [#allocation6], 0
    %17 = vsyncpa [#allocation9], 0
    %18 = vsyncpa [#allocation4], 0
    %19 = vsyncpa [#allocation13], 0
    // Predicated region
    $region2: #{tpu_custom_call.1} parent=1 // pred_check
      _
    $region3: #{tpu_custom_call.1} parent=1 // pred_check_branch
      %21 = sbr.rel (0) target = $region5
    $region4: #{tpu_custom_call.1} parent=1 // pred_region
      %23 = vsyncadd [#allocation3], 0
      %s25 = sshll.u32 %s0, 4
      %s26 = int_to_ptr.hbm [resolvable:$true] %s25
      %s27 = sshll.u32 [#allocation2], 4
      %s28 = int_to_ptr.vmem [resolvable:$true] %s27
      %30 = dma.hbm_to_vmem [thread:$0]  %s26, 128, %s28, [#allocation3]
    $region5: #{tpu_custom_call.1} parent=1 // pred_fallthru
      _
    // Predicated region
    $region6: #{tpu_custom_call.1} parent=1 // pred_check
      _
    $region7: #{tpu_custom_call.1} parent=1 // pred_check_branch
      %32 = sbr.rel (0) target = $region9
    $region8: #{tpu_custom_call.1} parent=1 // pred_region
      %34 = vsyncadd [#allocation6], 0
      %s35 = sshll.u32 %s1, 4
      %s36 = int_to_ptr.hbm [resolvable:$true] %s35
      %s37 = sshll.u32 [#allocation5], 4
      %s38 = int_to_ptr.vmem [resolvable:$true] %s37
      %43 = dma.hbm_to_vmem [thread:$0]  %s36, 1024, %s38, [#allocation6], 64, 64, 4
    $region9: #{tpu_custom_call.1} parent=1 // pred_fallthru
      _
    // Predicated region
    $region10: #{tpu_custom_call.1} parent=1 // pred_check
      _
    $region11: #{tpu_custom_call.1} parent=1 // pred_check_branch
      %45 = sbr.rel (0) target = $region13
    $region12: #{tpu_custom_call.1} parent=1 // pred_region
      %47 = vsyncadd [#allocation6], 0
      %s49 = sshll.u32 %s2, 4
      %s50 = int_to_ptr.hbm [resolvable:$true] %s49
      %s51 = sshll.u32 [#allocation7], 4
      %s52 = int_to_ptr.vmem [resolvable:$true] %s51
      %54 = dma.hbm_to_vmem [thread:$0]  %s50, 32, %s52, [#allocation6]
    $region13: #{tpu_custom_call.1} parent=1 // pred_fallthru
      _
    // Predicated region
    $region14: #{tpu_custom_call.1} parent=1 // pred_check
      _
    $region15: #{tpu_custom_call.1} parent=1 // pred_check_branch
      %56 = sbr.rel (0) target = $region17
    $region16: #{tpu_custom_call.1} parent=1 // pred_region
      %58 = vsyncadd [#allocation9], 0
      %s59 = sshll.u32 %s3, 4
      %s60 = int_to_ptr.hbm [resolvable:$true] %s59
      %s61 = sshll.u32 [#allocation8], 4
      %s62 = int_to_ptr.vmem [resolvable:$true] %s61
      %67 = dma.hbm_to_vmem [thread:$0]  %s60, 1024, %s62, [#allocation9], 64, 64, 4
    $region17: #{tpu_custom_call.1} parent=1 // pred_fallthru
      _
    // Predicated region
    $region18: #{tpu_custom_call.1} parent=1 // pred_check
      _
    $region19: #{tpu_custom_call.1} parent=1 // pred_check_branch
      %69 = sbr.rel (0) target = $region21
    $region20: #{tpu_custom_call.1} parent=1 // pred_region
      _
    $region21: #{tpu_custom_call.1} parent=1 // pred_fallthru
      _
    // Predicated region
    $region22: #{tpu_custom_call.1} parent=1 // pred_check
      _
    $region23: #{tpu_custom_call.1} parent=1 // pred_check_branch
      %71 = sbr.rel (0) target = $region25
    $region24: #{tpu_custom_call.1} parent=1 // pred_region
      %73 = vsyncadd [#allocation9], 0
      %s74 = sshll.u32 %s5, 4
      %s75 = int_to_ptr.hbm [resolvable:$true] %s74
      %s76 = sshll.u32 [#allocation10], 4
      %s77 = int_to_ptr.vmem [resolvable:$true] %s76
      %82 = dma.hbm_to_vmem [thread:$0]  %s75, 1024, %s77, [#allocation9], 64, 64, 4
    $region25: #{tpu_custom_call.1} parent=1 // pred_fallthru
      _
    // Predicated region
    $region26: #{tpu_custom_call.1} parent=1 // pred_check
      _
    $region27: #{tpu_custom_call.1} parent=1 // pred_check_branch
      %84 = sbr.rel (0) target = $region29
    $region28: #{tpu_custom_call.1} parent=1 // pred_region
      _
    $region29: #{tpu_custom_call.1} parent=1 // pred_fallthru
      _
    // Predicated region
    $region30: #{tpu_custom_call.1} parent=1 // pred_check
      _
    $region31: #{tpu_custom_call.1} parent=1 // pred_check_branch
      %86 = sbr.rel (0) target = $region33
    $region32: #{tpu_custom_call.1} parent=1 // pred_region
      %88 = dma.done [#allocation3], 128
    $region33: #{tpu_custom_call.1} parent=1 // pred_fallthru
      _
    // Predicated region
    $region34: #{tpu_custom_call.1} parent=1 // pred_check
      _
    $region35: #{tpu_custom_call.1} parent=1 // pred_check_branch
      %90 = sbr.rel (0) target = $region37
    $region36: #{tpu_custom_call.1} parent=1 // pred_region
      %92 = dma.done [#allocation6], 1024
    $region37: #{tpu_custom_call.1} parent=1 // pred_fallthru
      _
    // Predicated region
    $region38: #{tpu_custom_call.1} parent=1 // pred_check
      _
    $region39: #{tpu_custom_call.1} parent=1 // pred_check_branch
      %94 = sbr.rel (0) target = $region41
    $region40: #{tpu_custom_call.1} parent=1 // pred_region
      %96 = dma.done [#allocation6], 32
    $region41: #{tpu_custom_call.1} parent=1 // pred_fallthru
      _
    // Predicated region
    $region42: #{tpu_custom_call.1} parent=1 // pred_check
      _
    $region43: #{tpu_custom_call.1} parent=1 // pred_check_branch
      %98 = sbr.rel (0) target = $region45
    $region44: #{tpu_custom_call.1} parent=1 // pred_region
      %100 = dma.done [#allocation9], 1024
    $region45: #{tpu_custom_call.1} parent=1 // pred_fallthru
      _
    // Predicated region
    $region46: #{tpu_custom_call.1} parent=1 // pred_check
      _
    $region47: #{tpu_custom_call.1} parent=1 // pred_check_branch
      %102 = sbr.rel (0) target = $region49
    $region48: #{tpu_custom_call.1} parent=1 // pred_region
      %104 = dma.done [#allocation9], 1024
    $region49: #{tpu_custom_call.1} parent=1 // pred_fallthru
      _
    %v105 = vld [vmem:[#allocation2] sm:$0xff]
    %v106 = vpack.c.bf16 %v105, %v105
    %v107 = vld [vmem:[#allocation5] sm:$0xf]
    %v108 = vld [vmem:[#allocation5 + $0x4] sm:$0xf]
    %v109 = vld [vmem:[#allocation5 + $0x8] sm:$0xf]
    %v110 = vld [vmem:[#allocation5 + $0xc] sm:$0xf]
    %v111 = vld [vmem:[#allocation5 + $0x10] sm:$0xf]
    %v112 = vld [vmem:[#allocation5 + $0x14] sm:$0xf]
    %v113 = vld [vmem:[#allocation5 + $0x18] sm:$0xf]
    %v114 = vld [vmem:[#allocation5 + $0x1c] sm:$0xf]
    %v115 = vld [vmem:[#allocation5 + $0x20] sm:$0xf]
    %v116 = vld [vmem:[#allocation5 + $0x24] sm:$0xf]
    %v117 = vld [vmem:[#allocation5 + $0x28] sm:$0xf]
    %v118 = vld [vmem:[#allocation5 + $0x2c] sm:$0xf]
    %v119 = vld [vmem:[#allocation5 + $0x30] sm:$0xf]
    %v120 = vld [vmem:[#allocation5 + $0x34] sm:$0xf]
    %v121 = vld [vmem:[#allocation5 + $0x38] sm:$0xf]
    %v122 = vld [vmem:[#allocation5 + $0x3c] sm:$0xf]
    %v123 = vld [vmem:[#allocation7] sm:$0x3]
    %v140 = vunpack.c.l.b16 %v107
    %v141 = vunpack.c.l.b16 %v108
    %v142 = vunpack.c.l.b16 %v109
    %v143 = vunpack.c.l.b16 %v110
    %v144 = vunpack.c.l.b16 %v111
    %v145 = vunpack.c.l.b16 %v112
    %v146 = vunpack.c.l.b16 %v113
    %v147 = vunpack.c.l.b16 %v114
    %v148 = vunpack.c.l.b16 %v115
    %v149 = vunpack.c.l.b16 %v116
    %v150 = vunpack.c.l.b16 %v117
    %v151 = vunpack.c.l.b16 %v118
    %v152 = vunpack.c.l.b16 %v119
    %v153 = vunpack.c.l.b16 %v120
    %v154 = vunpack.c.l.b16 %v121
    %v155 = vunpack.c.l.b16 %v122
    %v156 = vpack.c.b16 %v141, %v140
    %v157 = vpack.c.b16 %v143, %v142
    %v158 = vpack.c.b16 %v145, %v144
    %v159 = vpack.c.b16 %v147, %v146
    %v160 = vpack.c.b16 %v149, %v148
    %v161 = vpack.c.b16 %v151, %v150
    %v162 = vpack.c.b16 %v153, %v152
    %v163 = vpack.c.b16 %v155, %v154
    %172 = vmatpush.bf16.msra.mxu0 %v163
    %173 = vmatpush.bf16.msra.mxu0 %v162
    %174 = vmatpush.bf16.msra.mxu0 %v161
    %175 = vmatpush.bf16.msra.mxu0 %v160
    %176 = vmatpush.bf16.msra.mxu0 %v159
    %177 = vmatpush.bf16.msra.mxu0 %v158
    %178 = vmatpush.bf16.msra.mxu0 %v157
    %179 = vmatpush.bf16.msra.mxu0 %v156
    %180 = vmatmul.bf16.gmra.mxu0 %v106
    %v181 = vpop.f32.mrf.mxu0
    %v182 = vadd.f32 0.0, %v181
    %v183 = vpop.f32.mrf.mxu0
    %184 = vdwg.mxu0
    %v185 = vperm.slane %v123, 0
    %v186 = vmul.f32 %v182, %v185
    %v187 = vperm.slane %v123, 1
    %v188 = vadd.f32 %v186, %v187
    %v189 = vmax.f32 %v188, 0.0
    %190 = vst [vmem:[#allocation11] sm:$0xff] %v189
    %v191 = vpack.c.bf16 %v189, %v189
    %v192 = vld [vmem:[#allocation8] sm:$0xf]
    %v193 = vld [vmem:[#allocation8 + $0x4] sm:$0xf]
    %v194 = vld [vmem:[#allocation8 + $0x8] sm:$0xf]
    %v195 = vld [vmem:[#allocation8 + $0xc] sm:$0xf]
    %v196 = vld [vmem:[#allocation8 + $0x10] sm:$0xf]
    %v197 = vld [vmem:[#allocation8 + $0x14] sm:$0xf]
    %v198 = vld [vmem:[#allocation8 + $0x18] sm:$0xf]
    %v199 = vld [vmem:[#allocation8 + $0x1c] sm:$0xf]
    %v200 = vld [vmem:[#allocation8 + $0x20] sm:$0xf]
    %v201 = vld [vmem:[#allocation8 + $0x24] sm:$0xf]
    %v202 = vld [vmem:[#allocation8 + $0x28] sm:$0xf]
    %v203 = vld [vmem:[#allocation8 + $0x2c] sm:$0xf]
    %v204 = vld [vmem:[#allocation8 + $0x30] sm:$0xf]
    %v205 = vld [vmem:[#allocation8 + $0x34] sm:$0xf]
    %v206 = vld [vmem:[#allocation8 + $0x38] sm:$0xf]
    %v207 = vld [vmem:[#allocation8 + $0x3c] sm:$0xf]
    %v208 = vld [vmem:[%s4] sm:$0x3]
    %v225 = vunpack.c.l.b16 %v192
    %v226 = vunpack.c.l.b16 %v193
    %v227 = vunpack.c.l.b16 %v194
    %v228 = vunpack.c.l.b16 %v195
    %v229 = vunpack.c.l.b16 %v196
    %v230 = vunpack.c.l.b16 %v197
    %v231 = vunpack.c.l.b16 %v198
    %v232 = vunpack.c.l.b16 %v199
    %v233 = vunpack.c.l.b16 %v200
    %v234 = vunpack.c.l.b16 %v201
    %v235 = vunpack.c.l.b16 %v202
    %v236 = vunpack.c.l.b16 %v203
    %v237 = vunpack.c.l.b16 %v204
    %v238 = vunpack.c.l.b16 %v205
    %v239 = vunpack.c.l.b16 %v206
    %v240 = vunpack.c.l.b16 %v207
    %v241 = vpack.c.b16 %v226, %v225
    %v242 = vpack.c.b16 %v228, %v227
    %v243 = vpack.c.b16 %v230, %v229
    %v244 = vpack.c.b16 %v232, %v231
    %v245 = vpack.c.b16 %v234, %v233
    %v246 = vpack.c.b16 %v236, %v235
    %v247 = vpack.c.b16 %v238, %v237
    %v248 = vpack.c.b16 %v240, %v239
    %257 = vmatpush.bf16.msra.mxu0 %v248
    %258 = vmatpush.bf16.msra.mxu0 %v247
    %259 = vmatpush.bf16.msra.mxu0 %v246
    %260 = vmatpush.bf16.msra.mxu0 %v245
    %261 = vmatpush.bf16.msra.mxu0 %v244
    %262 = vmatpush.bf16.msra.mxu0 %v243
    %263 = vmatpush.bf16.msra.mxu0 %v242
    %264 = vmatpush.bf16.msra.mxu0 %v241
    %265 = vmatmul.bf16.gmra.mxu0 %v191
    %v266 = vpop.f32.mrf.mxu0
    %v267 = vadd.f32 0.0, %v266
    %v268 = vpop.f32.mrf.mxu0
    %269 = vdwg.mxu0
    %v270 = vperm.slane %v208, 0
    %v271 = vmul.f32 %v267, %v270
    %v272 = vperm.slane %v208, 1
    %v273 = vadd.f32 %v271, %v272
    %v274 = vmax.f32 %v273, 0.0
    %275 = vst [vmem:[#allocation12] sm:$0xff] %v274
    %v276 = vpack.c.bf16 %v274, %v274
    %v277 = vld [vmem:[#allocation10] sm:$0xf]
    %v278 = vld [vmem:[#allocation10 + $0x4] sm:$0xf]
    %v279 = vld [vmem:[#allocation10 + $0x8] sm:$0xf]
    %v280 = vld [vmem:[#allocation10 + $0xc] sm:$0xf]
    %v281 = vld [vmem:[#allocation10 + $0x10] sm:$0xf]
    %v282 = vld [vmem:[#allocation10 + $0x14] sm:$0xf]
    %v283 = vld [vmem:[#allocation10 + $0x18] sm:$0xf]
    %v284 = vld [vmem:[#allocation10 + $0x1c] sm:$0xf]
    %v285 = vld [vmem:[#allocation10 + $0x20] sm:$0xf]
    %v286 = vld [vmem:[#allocation10 + $0x24] sm:$0xf]
    %v287 = vld [vmem:[#allocation10 + $0x28] sm:$0xf]
    %v288 = vld [vmem:[#allocation10 + $0x2c] sm:$0xf]
    %v289 = vld [vmem:[#allocation10 + $0x30] sm:$0xf]
    %v290 = vld [vmem:[#allocation10 + $0x34] sm:$0xf]
    %v291 = vld [vmem:[#allocation10 + $0x38] sm:$0xf]
    %v292 = vld [vmem:[#allocation10 + $0x3c] sm:$0xf]
    %v293 = vld [vmem:[%s6] sm:$0x1]
    %v295 = vperm.slane %v293, 0
    %v313 = vunpack.c.l.b16 %v277
    %v314 = vunpack.c.l.b16 %v278
    %v315 = vunpack.c.l.b16 %v279
    %v316 = vunpack.c.l.b16 %v280
    %v317 = vunpack.c.l.b16 %v281
    %v318 = vunpack.c.l.b16 %v282
    %v319 = vunpack.c.l.b16 %v283
    %v320 = vunpack.c.l.b16 %v284
    %v321 = vunpack.c.l.b16 %v285
    %v322 = vunpack.c.l.b16 %v286
    %v323 = vunpack.c.l.b16 %v287
    %v324 = vunpack.c.l.b16 %v288
    %v325 = vunpack.c.l.b16 %v289
    %v326 = vunpack.c.l.b16 %v290
    %v327 = vunpack.c.l.b16 %v291
    %v328 = vunpack.c.l.b16 %v292
    %v329 = vpack.c.b16 %v314, %v313
    %v330 = vpack.c.b16 %v316, %v315
    %v331 = vpack.c.b16 %v318, %v317
    %v332 = vpack.c.b16 %v320, %v319
    %v333 = vpack.c.b16 %v322, %v321
    %v334 = vpack.c.b16 %v324, %v323
    %v335 = vpack.c.b16 %v326, %v325
    %v336 = vpack.c.b16 %v328, %v327
    %345 = vmatpush.bf16.msra.mxu0 %v336
    %346 = vmatpush.bf16.msra.mxu0 %v335
    %347 = vmatpush.bf16.msra.mxu0 %v334
    %348 = vmatpush.bf16.msra.mxu0 %v333
    %349 = vmatpush.bf16.msra.mxu0 %v332
    %350 = vmatpush.bf16.msra.mxu0 %v331
    %351 = vmatpush.bf16.msra.mxu0 %v330
    %352 = vmatpush.bf16.msra.mxu0 %v329
    %353 = vmatmul.bf16.gmra.mxu0 %v276
    %v354 = vpop.f32.mrf.mxu0
    %v355 = vadd.f32 %v295, %v354
    %v356 = vpop.f32.mrf.mxu0
    %357 = vdwg.mxu0
    %v358 = vsub.f32 0.0, %v355
    %v359 = vmul.f32 %v358, 1.442695
    %v360 = vpow.pop %v359
    %v361 = vadd.f32 %v360, 1.0
    %v362 = vrcp.pop %v361
    %v363 = vmul.f32 %v361, %v362
    %v364 = vsub.f32 1.0, %v363
    %v365 = vmul.f32 %v362, %v364
    %v366 = vadd.f32 %v362, %v365
    %vm367 = vweird.f32 %v361
    %vm368 = vweird.f32 %v362
    %vm369 = vmor %vm367, %vm368
    %v370 = vsel %vm369, %v362, %v366
    %v371 = vand.u32 2147483647, %v361
    %vm372 = vcmp.eq.f32.partialorder %v371, 8.507059e+37
    %v373 = vand.u32 %v361, 2147483648
    %v374 = vor.u32 1.1754944e-38, %v373
    %v375 = vsel %vm372, %v374, %v370
    %v376 = vmul.f32 1.0, %v375
    %377 = vst [vmem:[#allocation14] sm:$0xff] %v376
    // Predicated region
    $region50: #{tpu_custom_call.1} parent=1 // pred_check
      _
    $region51: #{tpu_custom_call.1} parent=1 // pred_check_branch
      %379 = sbr.rel (0) target = $region53
    $region52: #{tpu_custom_call.1} parent=1 // pred_region
      %381 = vsyncadd [#allocation4], 0
      %s383 = sshll.u32 [#allocation11], 4
      %s384 = int_to_ptr.vmem [resolvable:$true] %s383
      %s385 = sshll.u32 %s7, 4
      %s386 = int_to_ptr.hbm [resolvable:$true] %s385
      %388 = dma.vmem_to_hbm [thread:$0]  %s384, 128, %s386, [#allocation4]
    $region53: #{tpu_custom_call.1} parent=1 // pred_fallthru
      _
    // Predicated region
    $region54: #{tpu_custom_call.1} parent=1 // pred_check
      _
    $region55: #{tpu_custom_call.1} parent=1 // pred_check_branch
      %390 = sbr.rel (0) target = $region57
    $region56: #{tpu_custom_call.1} parent=1 // pred_region
      %392 = vsyncadd [#allocation13], 0
      %s394 = sshll.u32 [#allocation12], 4
      %s395 = int_to_ptr.vmem [resolvable:$true] %s394
      %s396 = sshll.u32 %s8, 4
      %s397 = int_to_ptr.hbm [resolvable:$true] %s396
      %399 = dma.vmem_to_hbm [thread:$0]  %s395, 128, %s397, [#allocation13]
    $region57: #{tpu_custom_call.1} parent=1 // pred_fallthru
      _
    // Predicated region
    $region58: #{tpu_custom_call.1} parent=1 // pred_check
      _
    $region59: #{tpu_custom_call.1} parent=1 // pred_check_branch
      %401 = sbr.rel (0) target = $region61
    $region60: #{tpu_custom_call.1} parent=1 // pred_region
      %403 = vsyncadd [#allocation13], 0
      %s405 = sshll.u32 [#allocation14], 4
      %s406 = int_to_ptr.vmem [resolvable:$true] %s405
      %s407 = sshll.u32 %s9, 4
      %s408 = int_to_ptr.hbm [resolvable:$true] %s407
      %410 = dma.vmem_to_hbm [thread:$0]  %s406, 128, %s408, [#allocation13]
    $region61: #{tpu_custom_call.1} parent=1 // pred_fallthru
      _
    // Predicated region
    $region62: #{tpu_custom_call.1} parent=1 // pred_check
      _
    $region63: #{tpu_custom_call.1} parent=1 // pred_check_branch
      %412 = sbr.rel (0) target = $region65
    $region64: #{tpu_custom_call.1} parent=1 // pred_region
      %414 = dma.done [#allocation4], 128
    $region65: #{tpu_custom_call.1} parent=1 // pred_fallthru
      _
    // Predicated region
    $region66: #{tpu_custom_call.1} parent=1 // pred_check
      _
    $region67: #{tpu_custom_call.1} parent=1 // pred_check_branch
      %416 = sbr.rel (0) target = $region69
    $region68: #{tpu_custom_call.1} parent=1 // pred_region
      %418 = dma.done [#allocation13], 128
    $region69: #{tpu_custom_call.1} parent=1 // pred_fallthru
      _
    // Predicated region
    $region70: #{tpu_custom_call.1} parent=1 // pred_check
      _
    $region71: #{tpu_custom_call.1} parent=1 // pred_check_branch
      %420 = sbr.rel (0) target = $region73
    $region72: #{tpu_custom_call.1} parent=1 // pred_region
      %422 = dma.done [#allocation13], 128
    $region73: #{tpu_custom_call.1} parent=1 // pred_fallthru
      _
    %423 = vsyncpa [#allocation3], 1
    %424 = vsyncpa [#allocation6], 1
    %425 = vsyncpa [#allocation9], 1
    %426 = vsyncpa [#allocation4], 1
    %427 = vsyncpa [#allocation13], 1

</llo_original>
